<compile_context>
chip_gen: v6e
topology: v6e:2x2x1
jax: 0.10.0
libtpu: 0.0.40
codegen_flags: <defaults>
</compile_context>

<pallas_src>
import jax
import jax.numpy as jnp
from jax.experimental import pallas as pl
from jax.experimental.pallas import tpu as pltpu

_LANES = 128


def _chrome_suppress_kernel(pred_ref, mask_ref, num_ref, den_ref):
    # pred_ref: (3, TR, 128)  -- R/G/B planes of one batch element's row tile
    # mask_ref: (1, TR, 128)
    # num_ref / den_ref: (1, 1, SUB, 128) lane-dense partial-sum outputs
    r = pred_ref[0].astype(jnp.float32)
    g = pred_ref[1].astype(jnp.float32)
    b = pred_ref[2].astype(jnp.float32)
    m = mask_ref[0].astype(jnp.float32)

    chroma = (r - g) ** 2 + (g - b) ** 2 + (b - r) ** 2
    prod = chroma * m

    tr = prod.shape[0]
    sub = num_ref.shape[2]
    # Sublane-regroup + sum over the leading axis: pure VPU adds, no cross-lane
    # XLU reduce per step.  Final (tiny) reduction happens outside the kernel.
    num_ref[0, 0] = prod.reshape(tr // sub, sub, _LANES).sum(axis=0)
    den_ref[0, 0] = m.reshape(tr // sub, sub, _LANES).sum(axis=0)


def chrome_suppress_loss(pred, mask, weight=1.0):
    """Pallas implementation of ChromeSuppressLoss.forward.

    pred: (N, 3, H, W); mask: (N, C_m, H, W) (only channel 0 used).
    returns: weight * sum(((R-G)^2+(G-B)^2+(B-R)^2) * mask0) / sum(mask0)
    """
    N, C, H, W = pred.shape
    assert C == 3, "pred must have 3 channels (RGB)"
    HW = H * W

    # ---- lane-dense flattening (free reshape when HW % 128 == 0) ----
    pred2 = pred.reshape(N * 3, HW)
    mask2 = mask[:, 0, :, :].reshape(N, HW)

    pad = (-HW) % _LANES
    if pad:
        # zero padding: chroma = 0 and mask = 0 there, so sums are unaffected.
        pred2 = jnp.pad(pred2, ((0, 0), (0, pad)))
        mask2 = jnp.pad(mask2, ((0, 0), (0, pad)))
    R = (HW + pad) // _LANES

    pred_flat = pred2.reshape(N * 3, R, _LANES)
    mask_flat = mask2.reshape(N, R, _LANES)

    # ---- choose row tile TR: largest multiple-of-8 divisor of R, <= 1024 ----
    TR = None
    for cand in (1024, 512, 256, 128, 64, 32, 16, 8):
        if R % cand == 0:
            TR = cand
            break
    if TR is None:
        if R <= 1024:
            TR = R  # small image: one row tile per batch element
        else:
            # Rare: large R not divisible by 8 -> pad rows (zeros are inert).
            rpad = (-R) % 256
            pred_flat = jnp.pad(pred_flat, ((0, 0), (0, rpad), (0, 0)))
            mask_flat = jnp.pad(mask_flat, ((0, 0), (0, rpad), (0, 0)))
            R += rpad
            TR = 256
    num_tiles = R // TR
    SUB = 8 if TR % 8 == 0 else TR

    part_shape = jax.ShapeDtypeStruct((N, num_tiles, SUB, _LANES), jnp.float32)

    num_part, den_part = pl.pallas_call(
        _chrome_suppress_kernel,
        out_shape=(part_shape, part_shape),
        grid=(N, num_tiles),
        in_specs=[
            # (3, TR, 128) block: the 3 RGB planes of batch element n, row tile t.
            pl.BlockSpec((3, TR, _LANES), lambda n, t: (n, t, 0)),
            pl.BlockSpec((1, TR, _LANES), lambda n, t: (n, t, 0)),
        ],
        out_specs=(
            pl.BlockSpec((1, 1, SUB, _LANES), lambda n, t: (n, t, 0, 0)),
            pl.BlockSpec((1, 1, SUB, _LANES), lambda n, t: (n, t, 0, 0)),
        ),
        compiler_params=pltpu.CompilerParams(
            # Every grid step writes its own output block -> fully parallel
            # (both TensorCores on v7x; harmless on v5e/v6e).
            dimension_semantics=("parallel", "parallel"),
        ),
    )(pred_flat, mask_flat)

    num = jnp.sum(num_part)
    den = jnp.sum(den_part)
    # Match PyTorch exactly: no epsilon guard (sum(mask)==0 -> NaN/Inf, as in torch).
    return weight * (num / den)


def _reference(pred, mask, weight=1.0):
    m0 = mask[:, 0, :, :].astype(jnp.float32)
    R = pred[:, 0, :, :].astype(jnp.float32)
    G = pred[:, 1, :, :].astype(jnp.float32)
    B = pred[:, 2, :, :].astype(jnp.float32)
    num = jnp.sum(((R - G) ** 2 + (G - B) ** 2 + (B - R) ** 2) * m0)
    return weight * num / jnp.sum(m0)


if __name__ == "__main__":
    key = jax.random.PRNGKey(0)
    k1, k2, k3, k4 = jax.random.split(key, 4)

    # Test 1: small narrow image (exercises TR == R path).
    Nb, H, W = 2, 16, 16
    pred = jax.random.uniform(k1, (Nb, 3, H, W), dtype=jnp.float32)
    mask = (jax.random.uniform(k2, (Nb, 1, H, W)) > 0.3).astype(jnp.float32)
    out = jax.block_until_ready(chrome_suppress_loss(pred, mask, weight=1.0))
    ref = _reference(pred, mask, weight=1.0)
    assert jnp.allclose(out, ref, rtol=1e-5, atol=1e-5), (out, ref)

    # Test 2: lane-aligned width (exercises the SUB=8 sublane-partial path).
    Nb2, H2, W2 = 2, 16, 128
    pred2 = jax.random.uniform(k3, (Nb2, 3, H2, W2), dtype=jnp.float32)
    mask2 = (jax.random.uniform(k4, (Nb2, 1, H2, W2)) > 0.5).astype(jnp.float32)
    out2 = jax.block_until_ready(chrome_suppress_loss(pred2, mask2, weight=2.0))
    ref2 = _reference(pred2, mask2, weight=2.0)
    assert jnp.allclose(out2, ref2, rtol=1e-5, atol=1e-5), (out2, ref2)

    print("KERNEL_OK")
</pallas_src>

<mosaic_0001>
module attributes {stable_mosaic.version = 11 : i64} {
  func.func @_chrome_suppress_kernel(%arg0: i32, %arg1: i32, %arg2: memref<3x2x128xf32, #tpu.memory_space<vmem>>, %arg3: memref<1x2x128xf32, #tpu.memory_space<vmem>>, %arg4: memref<1x1x2x128xf32, #tpu.memory_space<vmem>>, %arg5: memref<1x1x2x128xf32, #tpu.memory_space<vmem>>) attributes {dimension_semantics = [#tpu.dimension_semantics<parallel>, #tpu.dimension_semantics<parallel>], iteration_bounds = array<i64: 2, 1>, scalar_prefetch = 0 : i64, scratch_operands = 0 : i64, tpu.core_type = #tpu.core_type<tc>, window_params = [{transform_indices = @transform_0, window_bounds = array<i64: 3, 2, 128>}, {transform_indices = @transform_1, window_bounds = array<i64: 1, 2, 128>}, {transform_indices = @transform_2, window_bounds = array<i64: 1, 1, 2, 128>}, {transform_indices = @transform_3, window_bounds = array<i64: 1, 1, 2, 128>}]} {
    %c0 = arith.constant 0 : index
    %c0_0 = arith.constant 0 : index
    %c0_1 = arith.constant 0 : index
    %0 = vector.load %arg2[%c0, %c0_0, %c0_1] : memref<3x2x128xf32, #tpu.memory_space<vmem>>, vector<1x2x128xf32>
    %1 = vector.shape_cast %0 : vector<1x2x128xf32> to vector<2x128xf32>
    %c1 = arith.constant 1 : index
    %c0_2 = arith.constant 0 : index
    %c0_3 = arith.constant 0 : index
    %2 = vector.load %arg2[%c1, %c0_2, %c0_3] : memref<3x2x128xf32, #tpu.memory_space<vmem>>, vector<1x2x128xf32>
    %3 = vector.shape_cast %2 : vector<1x2x128xf32> to vector<2x128xf32>
    %c2 = arith.constant 2 : index
    %c0_4 = arith.constant 0 : index
    %c0_5 = arith.constant 0 : index
    %4 = vector.load %arg2[%c2, %c0_4, %c0_5] : memref<3x2x128xf32, #tpu.memory_space<vmem>>, vector<1x2x128xf32>
    %5 = vector.shape_cast %4 : vector<1x2x128xf32> to vector<2x128xf32>
    %c0_6 = arith.constant 0 : index
    %c0_7 = arith.constant 0 : index
    %c0_8 = arith.constant 0 : index
    %6 = vector.load %arg3[%c0_6, %c0_7, %c0_8] : memref<1x2x128xf32, #tpu.memory_space<vmem>>, vector<1x2x128xf32>
    %7 = vector.shape_cast %6 : vector<1x2x128xf32> to vector<2x128xf32>
    %8 = arith.subf %1, %3 : vector<2x128xf32>
    %9 = arith.mulf %8, %8 : vector<2x128xf32>
    %10 = arith.subf %3, %5 : vector<2x128xf32>
    %11 = arith.mulf %10, %10 : vector<2x128xf32>
    %12 = arith.addf %9, %11 : vector<2x128xf32>
    %13 = arith.subf %5, %1 : vector<2x128xf32>
    %14 = arith.mulf %13, %13 : vector<2x128xf32>
    %15 = arith.addf %12, %14 : vector<2x128xf32>
    %16 = arith.mulf %15, %7 : vector<2x128xf32>
    %17 = vector.shape_cast %16 : vector<2x128xf32> to vector<1x2x128xf32>
    %cst = arith.constant dense<0.000000e+00> : vector<2x128xf32>
    %18 = vector.multi_reduction <add>, %17, %cst [0] : vector<1x2x128xf32> to vector<2x128xf32>
    %c0_9 = arith.constant 0 : index
    %c0_10 = arith.constant 0 : index
    %c0_11 = arith.constant 0 : index
    %c0_12 = arith.constant 0 : index
    %19 = vector.load %arg4[%c0_9, %c0_10, %c0_11, %c0_12] : memref<1x1x2x128xf32, #tpu.memory_space<vmem>>, vector<1x1x2x128xf32>
    %20 = vector.shape_cast %19 : vector<1x1x2x128xf32> to vector<2x128xf32>
    %21 = vector.shape_cast %18 : vector<2x128xf32> to vector<1x1x2x128xf32>
    tpu.vector_store %arg4[%c0_9, %c0_10, %c0_11, %c0_12], %21 {strides = array<i32>} : memref<1x1x2x128xf32, #tpu.memory_space<vmem>>, vector<1x1x2x128xf32>,
    %22 = vector.shape_cast %7 : vector<2x128xf32> to vector<1x2x128xf32>
    %cst_13 = arith.constant dense<0.000000e+00> : vector<2x128xf32>
    %23 = vector.multi_reduction <add>, %22, %cst_13 [0] : vector<1x2x128xf32> to vector<2x128xf32>
    %c0_14 = arith.constant 0 : index
    %c0_15 = arith.constant 0 : index
    %c0_16 = arith.constant 0 : index
    %c0_17 = arith.constant 0 : index
    %24 = vector.load %arg5[%c0_14, %c0_15, %c0_16, %c0_17] : memref<1x1x2x128xf32, #tpu.memory_space<vmem>>, vector<1x1x2x128xf32>
    %25 = vector.shape_cast %24 : vector<1x1x2x128xf32> to vector<2x128xf32>
    %26 = vector.shape_cast %23 : vector<2x128xf32> to vector<1x1x2x128xf32>
    tpu.vector_store %arg5[%c0_14, %c0_15, %c0_16, %c0_17], %26 {strides = array<i32>} : memref<1x1x2x128xf32, #tpu.memory_space<vmem>>, vector<1x1x2x128xf32>,
    return
  }
  func.func @transform_0(%arg0: i32, %arg1: i32) -> (i32, i32, i32) {
    %c0_i32 = arith.constant 0 : i32
    %c0_i32_0 = arith.constant 0 : i32
    return %arg0, %arg1, %c0_i32 : i32, i32, i32
  }
  func.func @transform_1(%arg0: i32, %arg1: i32) -> (i32, i32, i32) {
    %c0_i32 = arith.constant 0 : i32
    %c0_i32_0 = arith.constant 0 : i32
    return %arg0, %arg1, %c0_i32 : i32, i32, i32
  }
  func.func @transform_2(%arg0: i32, %arg1: i32) -> (i32, i32, i32, i32) {
    %c0_i32 = arith.constant 0 : i32
    %c0_i32_0 = arith.constant 0 : i32
    %c0_i32_1 = arith.constant 0 : i32
    return %arg0, %arg1, %c0_i32, %c0_i32_0 : i32, i32, i32, i32
  }
  func.func @transform_3(%arg0: i32, %arg1: i32) -> (i32, i32, i32, i32) {
    %c0_i32 = arith.constant 0 : i32
    %c0_i32_0 = arith.constant 0 : i32
    %c0_i32_1 = arith.constant 0 : i32
    return %arg0, %arg1, %c0_i32, %c0_i32_0 : i32, i32, i32, i32
  }
}

</mosaic_0001>

<llo_original>
// kernel: tpu_custom_call.1
$region0: #{tpu_custom_call.1}
  #allocation0 [shape = 'u32[]', space=smem, size = 0x4, offset = 0x4, fixed_abs, tag = 'smem constant byte address 0x4 - core index']
  #allocation1 [shape = 'u32[144,128]{1,0:T(1,128)}', space=vmem, size = 0x12000, scoped, tag = 'internal scratch']
  %s0 = inlined_call_operand.hbm [shape: f32[6,2,128], index: 0, kind: input, shape index: {}]
  %s1 = inlined_call_operand.hbm [shape: f32[2,2,128], index: 1, kind: input, shape index: {}]
  %s2 = inlined_call_operand.hbm [shape: f32[2,1,2,128], index: 2, kind: output, shape index: {0}]
  %s3 = inlined_call_operand.hbm [shape: f32[2,1,2,128], index: 3, kind: output, shape index: {1}]
  %4 = xla_tuple %s2, %s3
  %s5 = sld [smem:[#allocation0]]
  $region57: #{tpu_custom_call.1} parent=0
    _
  %s7 = ssub.s32 1, %s5
  %s8 = scalar_select 0, %s7, %s5
  $region1: #{tpu_custom_call.1} parent=0
    #allocation2 [shape = 'u8[6144]{0}', space=vmem, size = 0x1800, scoped, tag = 'input window, operand 0']
    #allocation3 [shape = 's32[2]{0}', space=sflag, size = 0x8, scoped, tag = 'scoped memory for tpu_custom_call.1']
    #allocation4 [shape = 's32[2]{0}', space=sflag, size = 0x8, scoped, tag = 'scoped memory for tpu_custom_call.1']
    #allocation5 [shape = 'u8[2048]{0}', space=vmem, size = 0x800, scoped, tag = 'input window, operand 1']
    #allocation6 [shape = 's32[2]{0}', space=sflag, size = 0x8, scoped, tag = 'scoped memory for tpu_custom_call.1']
    #allocation7 [shape = 'u8[2048]{0}', space=vmem, size = 0x800, scoped, tag = 'output window, operand 0']
    #allocation8 [shape = 'u8[2048]{0}', space=vmem, size = 0x800, scoped, tag = 'output window, operand 1']
    #allocation9 [shape = 's32[2]{0}', space=sflag, size = 0x8, scoped, tag = 'scoped memory for tpu_custom_call.1']
    %9 = vsyncpa [#allocation3], 0
    %s10 = scalar_lea.sflag [#allocation3], 1
    %11 = vsyncpa %s10, 0
    %12 = vsyncpa [#allocation6], 0
    %s13 = scalar_lea.sflag [#allocation6], 1
    %14 = vsyncpa %s13, 0
    %15 = vsyncpa [#allocation4], 0
    %s16 = scalar_lea.sflag [#allocation4], 1
    %17 = vsyncpa %s16, 0
    %18 = vsyncpa [#allocation9], 0
    %s19 = scalar_lea.sflag [#allocation9], 1
    %20 = vsyncpa %s19, 0
    loop: start=0, step=1, limit=4
    $region2: #{tpu_custom_call.1} parent=1 // loop_pre_header
      _
    $region3: #{tpu_custom_call.1} parent=1 // loop_header
      %s22 = sphi 0, %s26
      %p23 = scmp.ge.s32.totalorder %s22, 4
      %s29 = sphi 0, %s41
      %s30 = sphi 0, %s37
      %s31 = sphi 0, %s29
      %s32 = sphi 0, %s30
      %s33 = sphi 0, %s31
      %s34 = sphi 0, %s32
      %s46 = sphi 0, %s48
      %s49 = sphi 0, %s46
      %s50 = sphi 0, %s49
      %s66 = sphi 0, %s50
      %s74 = sphi 0, %s76
      %s77 = sphi 0, %s74
      %s78 = sphi 0, %s77
      %s94 = sphi 0, %s78
      %s102 = sphi 0, %s104
      %s105 = sphi 0, %s102
      %s106 = sphi 0, %s105
      %s122 = sphi 0, %s106
      %s130 = sphi 0, %s132
      %s133 = sphi 0, %s130
      %s134 = sphi 0, %s133
      %s150 = sphi 0, %s134
    $region4: #{tpu_custom_call.1} parent=1 // loop_header_branch
      %25 = sbr.rel (%p23) target = $region8
    $region5: #{tpu_custom_call.1} parent=1 // loop_body
      %s27 = ssub.s32 %s22, 1
      %s28 = ssub.s32 %s22, 2
      %s35 = sadd.s32 1, %s30
      %p36 = scmp.ge.s32.totalorder %s35, 1
      %s37 = scalar_select %p36, 0, %s35
      %s38 = sadd.s32 1, %s29
      %s39 = scalar_select %p36, %s38, %s29
      %p40 = scmp.ge.s32.totalorder %s39, 2
      %s41 = scalar_select %p40, 0, %s39
      %s42 = ssub.s32 %s29, %s41
      %s43 = ssub.s32 %s30, %s37
      %s44 = sor.u32 %s42, %s43
      %p45 = scmp.eq.s32.totalorder %s44, 0
      %s47 = sadd.s32 %s46, 1
      %s48 = scalar_select %p45, %s46, %s47
      %p51 = pneg %p45
      %p52 = scmp.eq.s32.totalorder %s22, 1
      %p53 = por %p51, %p52
      %p54 = scmp.ne.s32.totalorder %s46, %s49
      %p55 = scmp.eq.s32.totalorder %s22, 0
      %p56 = por %p54, %p55
      %p57 = scmp.ne.s32.totalorder %s46, %s49
      %p58 = scmp.eq.s32.totalorder %s27, 1
      %p59 = por %p57, %p58
      %p60 = scmp.ne.s32.totalorder %s49, %s50
      %p61 = scmp.eq.s32.totalorder %s27, 0
      %p62 = por %p60, %p61
      %p63 = scmp.ne.s32.totalorder %s49, %s50
      %p64 = scmp.eq.s32.totalorder %s28, 1
      %p65 = por %p63, %p64
      %p67 = scmp.ne.s32.totalorder %s50, %s66
      %p68 = scmp.eq.s32.totalorder %s28, 0
      %p69 = por %p67, %p68
      %s70 = ssub.s32 %s29, %s41
      %s71 = ssub.s32 %s30, %s37
      %s72 = sor.u32 %s70, %s71
      %p73 = scmp.eq.s32.totalorder %s72, 0
      %s75 = sadd.s32 %s74, 1
      %s76 = scalar_select %p73, %s74, %s75
      %p79 = pneg %p73
      %p80 = scmp.eq.s32.totalorder %s22, 1
      %p81 = por %p79, %p80
      %p82 = scmp.ne.s32.totalorder %s74, %s77
      %p83 = scmp.eq.s32.totalorder %s22, 0
      %p84 = por %p82, %p83
      %p85 = scmp.ne.s32.totalorder %s74, %s77
      %p86 = scmp.eq.s32.totalorder %s27, 1
      %p87 = por %p85, %p86
      %p88 = scmp.ne.s32.totalorder %s77, %s78
      %p89 = scmp.eq.s32.totalorder %s27, 0
      %p90 = por %p88, %p89
      %p91 = scmp.ne.s32.totalorder %s77, %s78
      %p92 = scmp.eq.s32.totalorder %s28, 1
      %p93 = por %p91, %p92
      %p95 = scmp.ne.s32.totalorder %s78, %s94
      %p96 = scmp.eq.s32.totalorder %s28, 0
      %p97 = por %p95, %p96
      %s98 = ssub.s32 %s29, %s41
      %s99 = ssub.s32 %s30, %s37
      %s100 = sor.u32 %s98, %s99
      %p101 = scmp.eq.s32.totalorder %s100, 0
      %s103 = sadd.s32 %s102, 1
      %s104 = scalar_select %p101, %s102, %s103
      %p107 = pneg %p101
      %p108 = scmp.eq.s32.totalorder %s22, 1
      %p109 = por %p107, %p108
      %p110 = scmp.ne.s32.totalorder %s102, %s105
      %p111 = scmp.eq.s32.totalorder %s22, 0
      %p112 = por %p110, %p111
      %p113 = scmp.ne.s32.totalorder %s102, %s105
      %p114 = scmp.eq.s32.totalorder %s27, 1
      %p115 = por %p113, %p114
      %p116 = scmp.ne.s32.totalorder %s105, %s106
      %p117 = scmp.eq.s32.totalorder %s27, 0
      %p118 = por %p116, %p117
      %p119 = scmp.ne.s32.totalorder %s105, %s106
      %p120 = scmp.eq.s32.totalorder %s28, 1
      %p121 = por %p119, %p120
      %p123 = scmp.ne.s32.totalorder %s106, %s122
      %p124 = scmp.eq.s32.totalorder %s28, 0
      %p125 = por %p123, %p124
      %s126 = ssub.s32 %s29, %s41
      %s127 = ssub.s32 %s30, %s37
      %s128 = sor.u32 %s126, %s127
      %p129 = scmp.eq.s32.totalorder %s128, 0
      %s131 = sadd.s32 %s130, 1
      %s132 = scalar_select %p129, %s130, %s131
      %p135 = pneg %p129
      %p136 = scmp.eq.s32.totalorder %s22, 1
      %p137 = por %p135, %p136
      %p138 = scmp.ne.s32.totalorder %s130, %s133
      %p139 = scmp.eq.s32.totalorder %s22, 0
      %p140 = por %p138, %p139
      %p141 = scmp.ne.s32.totalorder %s130, %s133
      %p142 = scmp.eq.s32.totalorder %s27, 1
      %p143 = por %p141, %p142
      %p144 = scmp.ne.s32.totalorder %s133, %s134
      %p145 = scmp.eq.s32.totalorder %s27, 0
      %p146 = por %p144, %p145
      %p147 = scmp.ne.s32.totalorder %s133, %s134
      %p148 = scmp.eq.s32.totalorder %s28, 1
      %p149 = por %p147, %p148
      %p151 = scmp.ne.s32.totalorder %s134, %s150
      %p152 = scmp.eq.s32.totalorder %s28, 0
      %p153 = por %p151, %p152
      %p154 = scmp.le.s32.totalorder 1, %s22
      %p155 = scmp.lt.s32.totalorder %s22, 3
      %p156 = pnand %p154, %p155
      %p157 = pneg %p156
      // Predicated region
      $region9: #{tpu_custom_call.1} parent=5 // pred_check
        _
      $region10: #{tpu_custom_call.1} parent=5 // pred_check_branch
        %159 = sbr.rel (%p156) target = $region12
      $region11: #{tpu_custom_call.1} parent=5 // pred_region
        %s160 = ssub.s32 %s22, 1
      $region12: #{tpu_custom_call.1} parent=5 // pred_fallthru
        _
      %p161 = scmp.lt.s32.totalorder %s22, 2
      // Predicated region
      $region13: #{tpu_custom_call.1} parent=5 // pred_check
        %p162 = pneg %p161
      $region14: #{tpu_custom_call.1} parent=5 // pred_check_branch
        %164 = sbr.rel (%p162) target = $region16
      $region15: #{tpu_custom_call.1} parent=5 // pred_region
        // Predicated region
        $region17: #{tpu_custom_call.1} parent=15 // pred_check
          %p165 = pneg %p56
        $region18: #{tpu_custom_call.1} parent=15 // pred_check_branch
          %167 = sbr.rel (%p165) target = $region20
        $region19: #{tpu_custom_call.1} parent=15 // pred_region
          %s168 = sand.u32 %s46, 1
          %s169 = scalar_lea.sflag [#allocation3], %s168
          %s170 = sand.u32 %s46, 1
          %s171 = smul.addr %s170, 6
          %s172 = scalar_lea.vmem [#allocation2], %s171
          %s173 = smul.u32 3, %s29
          %s175 = ssub.s32 96, 96
          %176 = vsyncadd %s169, %s175
          %s177 = sadd.s32 %s30, %s173
          %s178 = smul.addr %s177, 32
          %s179 = scalar_lea.hbm %s0, %s178
          %s180 = sshll.u32 %s172, 4
          %s181 = int_to_ptr.vmem [resolvable:$true] %s180
          %186 = dma.hbm_to_vmem [thread:$0]  %s179, 96, %s181, %s169, 32, 32, 2
        $region20: #{tpu_custom_call.1} parent=15 // pred_fallthru
          _
        // Predicated region
        $region21: #{tpu_custom_call.1} parent=15 // pred_check
          %p187 = pneg %p84
        $region22: #{tpu_custom_call.1} parent=15 // pred_check_branch
          %189 = sbr.rel (%p187) target = $region24
        $region23: #{tpu_custom_call.1} parent=15 // pred_region
          %s190 = sand.u32 %s74, 1
          %s191 = scalar_lea.sflag [#allocation6], %s190
          %s192 = sand.u32 %s74, 1
          %s193 = smul.addr %s192, 2
          %s194 = scalar_lea.vmem [#allocation5], %s193
          %s196 = ssub.s32 32, 32
          %197 = vsyncadd %s191, %s196
          %s198 = sadd.s32 %s30, %s29
          %s199 = smul.addr %s198, 32
          %s200 = scalar_lea.hbm %s1, %s199
          %s202 = sshll.u32 %s194, 4
          %s203 = int_to_ptr.vmem [resolvable:$true] %s202
          %205 = dma.hbm_to_vmem [thread:$0]  %s200, 32, %s203, %s191
        $region24: #{tpu_custom_call.1} parent=15 // pred_fallthru
          _
      $region16: #{tpu_custom_call.1} parent=5 // pred_fallthru
        _
      %p206 = scmp.le.s32.totalorder 1, %s22
      %p207 = scmp.lt.s32.totalorder %s22, 3
      %p208 = pnand %p206, %p207
      %p209 = pneg %p208
      // Predicated region
      $region25: #{tpu_custom_call.1} parent=5 // pred_check
        _
      $region26: #{tpu_custom_call.1} parent=5 // pred_check_branch
        %211 = sbr.rel (%p208) target = $region28
      $region27: #{tpu_custom_call.1} parent=5 // pred_region
        %s212 = ssub.s32 %s22, 1
        %s213 = sand.u32 %s49, 1
        %s214 = scalar_lea.sflag [#allocation3], %s213
        %s215 = sand.u32 %s49, 1
        %s216 = smul.addr %s215, 6
        %s217 = scalar_lea.vmem [#allocation2], %s216
        // Predicated region
        $region29: #{tpu_custom_call.1} parent=27 // pred_check
          %p218 = pneg %p62
        $region30: #{tpu_custom_call.1} parent=27 // pred_check_branch
          %220 = sbr.rel (%p218) target = $region32
        $region31: #{tpu_custom_call.1} parent=27 // pred_region
          %221 = dma.done %s214, 96
        $region32: #{tpu_custom_call.1} parent=27 // pred_fallthru
          _
        %s222 = sand.u32 %s77, 1
        %s223 = scalar_lea.sflag [#allocation6], %s222
        %s224 = sand.u32 %s77, 1
        %s225 = smul.addr %s224, 2
        %s226 = scalar_lea.vmem [#allocation5], %s225
        // Predicated region
        $region33: #{tpu_custom_call.1} parent=27 // pred_check
          %p227 = pneg %p90
        $region34: #{tpu_custom_call.1} parent=27 // pred_check_branch
          %229 = sbr.rel (%p227) target = $region36
        $region35: #{tpu_custom_call.1} parent=27 // pred_region
          %230 = dma.done %s223, 32
        $region36: #{tpu_custom_call.1} parent=27 // pred_fallthru
          _
        %s231 = sand.u32 %s49, 1
        %s232 = scalar_lea.sflag [#allocation3], %s231
        %s233 = sand.u32 %s49, 1
        %s234 = smul.addr %s233, 6
        %s235 = scalar_lea.vmem [#allocation2], %s234
        %p236 = pneg %p62
        %p237 = pneg %p59
        %s238 = sand.u32 %s77, 1
        %s239 = scalar_lea.sflag [#allocation6], %s238
        %s240 = sand.u32 %s77, 1
        %s241 = smul.addr %s240, 2
        %s242 = scalar_lea.vmem [#allocation5], %s241
        %p243 = pneg %p90
        %p244 = pneg %p87
        %p245 = pneg %p118
        %p246 = pneg %p115
        %s247 = sand.u32 %s105, 1
        %s248 = scalar_lea.sflag [#allocation4], %s247
        %s249 = sand.u32 %s105, 1
        %s250 = smul.addr %s249, 2
        %s251 = scalar_lea.vmem [#allocation7], %s250
        %p252 = pneg %p146
        %p253 = pneg %p143
        %s254 = sand.u32 %s133, 1
        %s255 = scalar_lea.sflag [#allocation9], %s254
        %s256 = sand.u32 %s133, 1
        %s257 = smul.addr %s256, 2
        %s258 = scalar_lea.vmem [#allocation8], %s257
        %s259 = smul.u32 3, %s31
        %v260 = vld [vmem:[%s217] sm:$0x3]
        %s261 = scalar_lea.vmem %s217, 2 [#allocation2]
        %v262 = vld [vmem:[%s261] sm:$0x3]
        %s263 = scalar_lea.vmem %s217, 4 [#allocation2]
        %v264 = vld [vmem:[%s263] sm:$0x3]
        %v265 = vld [vmem:[%s226] sm:$0x3]
        %v266 = vsub.f32 %v260, %v262
        %v267 = vmul.f32 %v266, %v266
        %v268 = vsub.f32 %v262, %v264
        %v269 = vmul.f32 %v268, %v268
        %v270 = vadd.f32 %v267, %v269
        %v271 = vsub.f32 %v264, %v260
        %v272 = vmul.f32 %v271, %v271
        %v273 = vadd.f32 %v270, %v272
        %v274 = vmul.f32 %v273, %v265
        %v275 = vadd.f32 %v274, 0.0
        %276 = vst [vmem:[%s251] sm:$0x3] %v275
        %v277 = vadd.f32 %v265, 0.0
        %278 = vst [vmem:[%s258] sm:$0x3] %v277
        %s279 = sand.u32 %s105, 1
        %s280 = scalar_lea.sflag [#allocation4], %s279
        %s281 = sand.u32 %s105, 1
        %s282 = smul.addr %s281, 2
        %s283 = scalar_lea.vmem [#allocation7], %s282
        %s284 = sand.u32 %s133, 1
        %s285 = scalar_lea.sflag [#allocation9], %s284
        %s286 = sand.u32 %s133, 1
        %s287 = smul.addr %s286, 2
        %s288 = scalar_lea.vmem [#allocation8], %s287
        // Predicated region
        $region37: #{tpu_custom_call.1} parent=27 // pred_check
          %p289 = pneg %p115
        $region38: #{tpu_custom_call.1} parent=27 // pred_check_branch
          %291 = sbr.rel (%p289) target = $region40
        $region39: #{tpu_custom_call.1} parent=27 // pred_region
          %s293 = ssub.s32 32, 32
          %294 = vsyncadd %s280, %s293
          %s295 = sadd.s32 %s32, %s31
          %s296 = smul.addr %s295, 32
          %s297 = scalar_lea.hbm %s2, %s296
          %s299 = sshll.u32 %s283, 4
          %s300 = int_to_ptr.vmem [resolvable:$true] %s299
          %302 = dma.vmem_to_hbm [thread:$0]  %s300, 32, %s297, %s280
        $region40: #{tpu_custom_call.1} parent=27 // pred_fallthru
          _
        // Predicated region
        $region41: #{tpu_custom_call.1} parent=27 // pred_check
          %p303 = pneg %p143
        $region42: #{tpu_custom_call.1} parent=27 // pred_check_branch
          %305 = sbr.rel (%p303) target = $region44
        $region43: #{tpu_custom_call.1} parent=27 // pred_region
          %s307 = ssub.s32 32, 32
          %308 = vsyncadd %s285, %s307
          %s309 = sadd.s32 %s32, %s31
          %s310 = smul.addr %s309, 32
          %s311 = scalar_lea.hbm %s3, %s310
          %s313 = sshll.u32 %s288, 4
          %s314 = int_to_ptr.vmem [resolvable:$true] %s313
          %316 = dma.vmem_to_hbm [thread:$0]  %s314, 32, %s311, %s285
        $region44: #{tpu_custom_call.1} parent=27 // pred_fallthru
          _
      $region28: #{tpu_custom_call.1} parent=5 // pred_fallthru
        _
      %p317 = scmp.le.s32.totalorder 2, %s22
      // Predicated region
      $region45: #{tpu_custom_call.1} parent=5 // pred_check
        %p318 = pneg %p317
      $region46: #{tpu_custom_call.1} parent=5 // pred_check_branch
        %320 = sbr.rel (%p318) target = $region48
      $region47: #{tpu_custom_call.1} parent=5 // pred_region
        %s321 = ssub.s32 %s22, 2
        // Predicated region
        $region49: #{tpu_custom_call.1} parent=47 // pred_check
          %p322 = pneg %p121
        $region50: #{tpu_custom_call.1} parent=47 // pred_check_branch
          %324 = sbr.rel (%p322) target = $region52
        $region51: #{tpu_custom_call.1} parent=47 // pred_region
          %s325 = sand.u32 %s106, 1
          %s326 = scalar_lea.sflag [#allocation4], %s325
          %s327 = sand.u32 %s106, 1
          %s328 = smul.addr %s327, 2
          %s329 = scalar_lea.vmem [#allocation7], %s328
          %330 = dma.done %s326, 32
        $region52: #{tpu_custom_call.1} parent=47 // pred_fallthru
          _
        // Predicated region
        $region53: #{tpu_custom_call.1} parent=47 // pred_check
          %p331 = pneg %p149
        $region54: #{tpu_custom_call.1} parent=47 // pred_check_branch
          %333 = sbr.rel (%p331) target = $region56
        $region55: #{tpu_custom_call.1} parent=47 // pred_region
          %s334 = sand.u32 %s134, 1
          %s335 = scalar_lea.sflag [#allocation9], %s334
          %s336 = sand.u32 %s134, 1
          %s337 = smul.addr %s336, 2
          %s338 = scalar_lea.vmem [#allocation8], %s337
          %339 = dma.done %s335, 32
        $region56: #{tpu_custom_call.1} parent=47 // pred_fallthru
          _
      $region48: #{tpu_custom_call.1} parent=5 // pred_fallthru
        _
    $region6: #{tpu_custom_call.1} parent=1 // loop_footer
      %s26 = sadd.s32 1, %s22
    $region7: #{tpu_custom_call.1} parent=1 // loop_footer_branch
      %21 = sbr.rel target = $region3
    $region8: #{tpu_custom_call.1} parent=1 // loop_exit
      _
    %340 = vsyncpa [#allocation3], 1
    %s341 = scalar_lea.sflag [#allocation3], 1
    %342 = vsyncpa %s341, 1
    %343 = vsyncpa [#allocation6], 1
    %s344 = scalar_lea.sflag [#allocation6], 1
    %345 = vsyncpa %s344, 1
    %346 = vsyncpa [#allocation4], 1
    %s347 = scalar_lea.sflag [#allocation4], 1
    %348 = vsyncpa %s347, 1
    %349 = vsyncpa [#allocation9], 1
    %s350 = scalar_lea.sflag [#allocation9], 1
    %351 = vsyncpa %s350, 1

</llo_original>
